<compile_context>
chip_gen: v7x
topology: tpu7x:2x2x1
jax: 0.10.0
libtpu: 0.0.40
codegen_flags: <defaults>
</compile_context>

<pallas_src>
import functools

import jax
import jax.numpy as jnp
from jax.experimental import pallas as pl
from jax.experimental.pallas import tpu as pltpu

L1_DIM, L2_DIM = 200, 300
NEG_SLOPE = 0.01          # F.leaky_relu default
LN_EPS = 1e-5             # nn.LayerNorm default

# Batch tiling:
#  * TILE_B caps the per-step tile so f32 intermediates (h2 = tile_b x 384 lanes)
#    stay inside scoped VMEM on every generation (v5e 16 MiB default, v6e/v7x 32 MiB).
#  * For B > SINGLE_TILE_MAX we always split into >= 2 tiles so the "parallel"
#    batch axis can shard across v7x's two TensorCores.
TILE_B = 2048
SINGLE_TILE_MAX = 256
VMEM_LIMIT_BYTES = 32 * 1024 * 1024


def _round_up(x, m):
    return ((x + m - 1) // m) * m


def _pick_tile_b(batch):
    if batch <= SINGLE_TILE_MAX:
        return batch                                   # tiny (deployment) batch: one block
    return min(TILE_B, _round_up(pl.cdiv(batch, 2), 8))  # >= 2 tiles, sublane-aligned


def _leaky_relu(x):
    return jnp.where(x > 0, x, NEG_SLOPE * x)


def _layer_norm(x, gamma, beta, eps=LN_EPS):
    # Centered variance (matches PyTorch's E[(x-mean)^2]); rsqrt -> EUP slot.
    mean = jnp.mean(x, axis=-1, keepdims=True)
    centered = x - mean
    var = jnp.mean(centered * centered, axis=-1, keepdims=True)
    return centered * jax.lax.rsqrt(var + eps) * gamma + beta


def _critic_v_kernel(layer_norm, matmul_dtype,
                     s_ref, w1_ref, b1_ref, w2_ref, b2_ref, w3_ref, b3_ref,
                     g1_ref, be1_ref, g2_ref, be2_ref,
                     out_ref):
    n = pl.program_id(0)                                # ensemble (network) index

    x = s_ref[...].astype(matmul_dtype)
    w1 = w1_ref[0].astype(matmul_dtype)                 # (S, 200)
    w2 = w2_ref[0].astype(matmul_dtype)                 # (200, 300)

    # --- layer 1: Linear(state_dim, 200) [+ LayerNorm] + LeakyReLU ---
    h1 = jnp.dot(x, w1, preferred_element_type=jnp.float32) + b1_ref[0]
    if layer_norm:
        h1 = _layer_norm(h1, g1_ref[0], be1_ref[0])
    h1 = _leaky_relu(h1)

    # --- layer 2: Linear(200, 300) [+ LayerNorm] + LeakyReLU ---
    h2 = jnp.dot(h1.astype(matmul_dtype), w2,
                 preferred_element_type=jnp.float32) + b2_ref[0]
    if layer_norm:
        h2 = _layer_norm(h2, g2_ref[0], be2_ref[0])
    h2 = _leaky_relu(h2)

    # --- layer 3: Linear(300, 1) as f32 VPU multiply + lane reduce against a
    #     (1, 300) weight row; b3 scalar lives in SMEM ---
    col = jnp.sum(h2 * w3_ref[0], axis=-1, keepdims=True) + b3_ref[n, 0]   # (tile_b, 1)

    # Lane-dense output: relayout the (tile_b, 1) column to a (1, tile_b) row so
    # stores are unmasked and the writeback DMA is contiguous.
    out_ref[...] = jnp.transpose(col).astype(out_ref.dtype)


def critic_v_forward_ensemble(state, params, *, layer_norm=False,
                              matmul_dtype=jnp.float32):
    """Run N CriticV networks (params stacked on a leading axis) on one state batch.

    state : (B, state_dim) float32
    params: dict whose leaves all have a leading ensemble axis N (see stack_critic_params)
    Returns (N, B, 1) float32.
    """
    B, state_dim = state.shape
    N = params["w1"].shape[0]
    tile_b = _pick_tile_b(B)
    n_b_tiles = pl.cdiv(B, tile_b)

    net = lambda n, b: (n, 0, 0)      # per-network weights, resident across batch tiles
    in_specs = [
        pl.BlockSpec((tile_b, state_dim), lambda n, b: (b, 0)),     # state (batch-tiled)
        pl.BlockSpec((1, state_dim, L1_DIM), net),                  # w1
        pl.BlockSpec((1, 1, L1_DIM), net),                          # b1
        pl.BlockSpec((1, L1_DIM, L2_DIM), net),                     # w2
        pl.BlockSpec((1, 1, L2_DIM), net),                          # b2
        pl.BlockSpec((1, 1, L2_DIM), net),                          # w3 (row vector)
        pl.BlockSpec(memory_space=pltpu.MemorySpace.SMEM),          # b3 (N, 1) scalars
        pl.BlockSpec((1, 1, L1_DIM), net),                          # g1
        pl.BlockSpec((1, 1, L1_DIM), net),                          # be1
        pl.BlockSpec((1, 1, L2_DIM), net),                          # g2
        pl.BlockSpec((1, 1, L2_DIM), net),                          # be2
    ]
    # Lane-dense output: one (1, tile_b) row per (network, batch-tile) grid step.
    out_spec = pl.BlockSpec((1, tile_b), lambda n, b: (n * n_b_tiles + b, 0))

    kernel = functools.partial(_critic_v_kernel, layer_norm, matmul_dtype)
    raw = pl.pallas_call(
        kernel,
        out_shape=jax.ShapeDtypeStruct((N * n_b_tiles, tile_b), jnp.float32),
        grid=(N, n_b_tiles),
        in_specs=in_specs,
        out_specs=out_spec,
        compiler_params=pltpu.CompilerParams(
            dimension_semantics=("parallel", "parallel"),
            vmem_limit_bytes=VMEM_LIMIT_BYTES),
    )(
        state,
        params["w1"], params["b1"],
        params["w2"], params["b2"],
        params["w3"], params["b3"],
        params["g1"], params["be1"],
        params["g2"], params["be2"],
    )
    # Drop rows computed from the padded part of a partial last batch tile
    # BEFORE reshaping, so padded garbage never escapes.
    out = raw.reshape(N, n_b_tiles * tile_b)[:, :B]
    return out.reshape(N, B, 1)


def critic_v_forward(state, params, *, layer_norm=False, matmul_dtype=jnp.float32):
    """Single CriticV forward: state (B, state_dim) -> (B, 1) float32."""
    stacked = jax.tree_util.tree_map(lambda p: p[None], params)
    return critic_v_forward_ensemble(state, stacked, layer_norm=layer_norm,
                                     matmul_dtype=matmul_dtype)[0]


def stack_critic_params(params_list):
    """Stack per-network param dicts along a leading axis so SAC's twin critics
    (and/or target networks) run in ONE fused pallas_call."""
    return jax.tree_util.tree_map(lambda *xs: jnp.stack(xs, axis=0), *params_list)


def _xavier_uniform(key, fan_in, fan_out, gain=1.0):
    # matches nn.init.xavier_uniform_ (gain=1)
    limit = gain * jnp.sqrt(6.0 / (fan_in + fan_out))
    return jax.random.uniform(key, (fan_in, fan_out), jnp.float32, -limit, limit)


def init_critic_v_params(key, state_dim):
    k1, k2, k3 = jax.random.split(key, 3)
    return {
        # Linear weights stored (in, out); biases zero-init (per initial_weights_)
        "w1": _xavier_uniform(k1, state_dim, L1_DIM),
        "b1": jnp.zeros((1, L1_DIM), jnp.float32),
        "w2": _xavier_uniform(k2, L1_DIM, L2_DIM),
        "b2": jnp.zeros((1, L2_DIM), jnp.float32),
        # l3 weight kept as a (1, 300) row for the VPU+reduce head
        "w3": _xavier_uniform(k3, L2_DIM, 1).reshape(1, L2_DIM),
        "b3": jnp.zeros((1,), jnp.float32),
        # LayerNorm params (PyTorch defaults: weight=1, bias=0)
        "g1": jnp.ones((1, L1_DIM), jnp.float32),
        "be1": jnp.zeros((1, L1_DIM), jnp.float32),
        "g2": jnp.ones((1, L2_DIM), jnp.float32),
        "be2": jnp.zeros((1, L2_DIM), jnp.float32),
    }


def _reference_forward(state, params, layer_norm=False):
    h1 = state @ params["w1"] + params["b1"]
    if layer_norm:
        h1 = _layer_norm(h1, params["g1"], params["be1"])
    h1 = _leaky_relu(h1)
    h2 = h1 @ params["w2"] + params["b2"]
    if layer_norm:
        h2 = _layer_norm(h2, params["g2"], params["be2"])
    h2 = _leaky_relu(h2)
    return h2 @ params["w3"].T + params["b3"]


if __name__ == "__main__":
    key = jax.random.PRNGKey(0)
    k_params, k_params2, k_state, k_big = jax.random.split(key, 4)

    batch, state_dim = 4, 32
    params = init_critic_v_params(k_params, state_dim)
    state = jax.random.normal(k_state, (batch, state_dim), jnp.float32)

    # 1) layer_norm=False (module default), tiny deployment batch, exact f32 path
    out = jax.block_until_ready(critic_v_forward(state, params, layer_norm=False))
    ref = _reference_forward(state, params, layer_norm=False)
    assert out.shape == (batch, 1)
    assert jnp.allclose(out, ref, atol=2e-4, rtol=2e-4)

    # 2) layer_norm=True path
    out_ln = jax.block_until_ready(critic_v_forward(state, params, layer_norm=True))
    ref_ln = _reference_forward(state, params, layer_norm=True)
    assert jnp.allclose(out_ln, ref_ln, atol=2e-4, rtol=2e-4)

    # 3) larger batch: >= 2 batch tiles, partial last tile, lane-dense output slicing
    big_b = 1000
    state_big = jax.random.normal(k_big, (big_b, state_dim), jnp.float32)
    out_big = jax.block_until_ready(
        critic_v_forward(state_big, params, layer_norm=True))
    ref_big = _reference_forward(state_big, params, layer_norm=True)
    assert out_big.shape == (big_b, 1)
    assert jnp.allclose(out_big, ref_big, atol=2e-4, rtol=2e-4)

    # 4) bf16 MXU inputs with f32 accumulation (perf option) — parity vs the f32
    #    reference is intentionally loose, per the review's correctness note.
    out_bf16 = jax.block_until_ready(
        critic_v_forward(state_big, params, layer_norm=True,
                         matmul_dtype=jnp.bfloat16))
    assert jnp.allclose(out_bf16, ref_big, atol=1e-1, rtol=1e-1)

    # 5) fused SAC twin critics: two networks, one pallas_call
    params_b = init_critic_v_params(k_params2, state_dim)
    twin = stack_critic_params([params, params_b])
    out_twin = jax.block_until_ready(
        critic_v_forward_ensemble(state, twin, layer_norm=True))
    assert out_twin.shape == (2, batch, 1)
    assert jnp.allclose(out_twin[0], _reference_forward(state, params, True),
                        atol=2e-4, rtol=2e-4)
    assert jnp.allclose(out_twin[1], _reference_forward(state, params_b, True),
                        atol=2e-4, rtol=2e-4)

    print("KERNEL_OK")
</pallas_src>

<mosaic_0001>
module attributes {stable_mosaic.version = 11 : i64} {
  func.func @_critic_v_kernel(%arg0: i32, %arg1: i32, %arg2: memref<4x32xf32, #tpu.memory_space<vmem>>, %arg3: memref<1x32x200xf32, #tpu.memory_space<vmem>>, %arg4: memref<1x1x200xf32, #tpu.memory_space<vmem>>, %arg5: memref<1x200x300xf32, #tpu.memory_space<vmem>>, %arg6: memref<1x1x300xf32, #tpu.memory_space<vmem>>, %arg7: memref<1x1x300xf32, #tpu.memory_space<vmem>>, %arg8: memref<1x1xf32, #tpu.memory_space<smem>>, %arg9: memref<1x1x200xf32, #tpu.memory_space<vmem>>, %arg10: memref<1x1x200xf32, #tpu.memory_space<vmem>>, %arg11: memref<1x1x300xf32, #tpu.memory_space<vmem>>, %arg12: memref<1x1x300xf32, #tpu.memory_space<vmem>>, %arg13: memref<1x4xf32, #tpu.memory_space<vmem>>) attributes {dimension_semantics = [#tpu.dimension_semantics<parallel>, #tpu.dimension_semantics<parallel>], iteration_bounds = array<i64: 1, 1>, scalar_prefetch = 0 : i64, scratch_operands = 0 : i64, tpu.core_type = #tpu.core_type<tc>, window_params = [{transform_indices = @transform_0, window_bounds = array<i64: 4, 32>}, {transform_indices = @transform_1, window_bounds = array<i64: 1, 32, 200>}, {transform_indices = @transform_2, window_bounds = array<i64: 1, 1, 200>}, {transform_indices = @transform_3, window_bounds = array<i64: 1, 200, 300>}, {transform_indices = @transform_4, window_bounds = array<i64: 1, 1, 300>}, {transform_indices = @transform_5, window_bounds = array<i64: 1, 1, 300>}, {transform_indices = @transform_6, window_bounds = array<i64: 1, 1>}, {transform_indices = @transform_7, window_bounds = array<i64: 1, 1, 200>}, {transform_indices = @transform_8, window_bounds = array<i64: 1, 1, 200>}, {transform_indices = @transform_9, window_bounds = array<i64: 1, 1, 300>}, {transform_indices = @transform_10, window_bounds = array<i64: 1, 1, 300>}, {transform_indices = @transform_11, window_bounds = array<i64: 1, 4>}]} {
    %c0 = arith.constant 0 : index
    %c0_0 = arith.constant 0 : index
    %0 = vector.load %arg2[%c0, %c0_0] : memref<4x32xf32, #tpu.memory_space<vmem>>, vector<4x32xf32>
    %c0_1 = arith.constant 0 : index
    %c0_2 = arith.constant 0 : index
    %c0_3 = arith.constant 0 : index
    %1 = vector.load %arg3[%c0_1, %c0_2, %c0_3] : memref<1x32x200xf32, #tpu.memory_space<vmem>>, vector<1x32x200xf32>
    %2 = vector.shape_cast %1 : vector<1x32x200xf32> to vector<32x200xf32>
    %c0_4 = arith.constant 0 : index
    %c0_5 = arith.constant 0 : index
    %c0_6 = arith.constant 0 : index
    %3 = vector.load %arg5[%c0_4, %c0_5, %c0_6] : memref<1x200x300xf32, #tpu.memory_space<vmem>>, vector<1x200x300xf32>
    %4 = vector.shape_cast %3 : vector<1x200x300xf32> to vector<200x300xf32>
    %cst = arith.constant dense<0.000000e+00> : vector<4x200xf32>
    %5 = tpu.matmul %0, %2, %cst {dimension_numbers = #tpu.dot_dimension_numbers<[1], [0], [0], [1], [0, 0, 1, 1], [], []>} : vector<4x32xf32>, vector<32x200xf32>, vector<4x200xf32> -> vector<4x200xf32>
    %c0_7 = arith.constant 0 : index
    %c0_8 = arith.constant 0 : index
    %c0_9 = arith.constant 0 : index
    %6 = vector.load %arg4[%c0_7, %c0_8, %c0_9] : memref<1x1x200xf32, #tpu.memory_space<vmem>>, vector<1x1x200xf32>
    %7 = vector.shape_cast %6 : vector<1x1x200xf32> to vector<1x200xf32>
    %8 = vector.broadcast %7 : vector<1x200xf32> to vector<4x200xf32>
    %9 = arith.addf %5, %8 : vector<4x200xf32>
    %cst_10 = arith.constant 0.000000e+00 : f32
    %10 = vector.broadcast %cst_10 : f32 to vector<4x200xf32>
    %11 = arith.cmpf ogt, %9, %10 : vector<4x200xf32>
    %cst_11 = arith.constant 0.00999999977 : f32
    %12 = vector.broadcast %cst_11 : f32 to vector<4x200xf32>
    %13 = arith.mulf %12, %9 : vector<4x200xf32>
    %14 = arith.select %11, %9, %13 : vector<4x200xi1>, vector<4x200xf32>
    %cst_12 = arith.constant dense<0.000000e+00> : vector<4x300xf32>
    %15 = tpu.matmul %14, %4, %cst_12 {dimension_numbers = #tpu.dot_dimension_numbers<[1], [0], [0], [1], [0, 0, 1, 1], [], []>} : vector<4x200xf32>, vector<200x300xf32>, vector<4x300xf32> -> vector<4x300xf32>
    %c0_13 = arith.constant 0 : index
    %c0_14 = arith.constant 0 : index
    %c0_15 = arith.constant 0 : index
    %16 = vector.load %arg6[%c0_13, %c0_14, %c0_15] : memref<1x1x300xf32, #tpu.memory_space<vmem>>, vector<1x1x300xf32>
    %17 = vector.shape_cast %16 : vector<1x1x300xf32> to vector<1x300xf32>
    %18 = vector.broadcast %17 : vector<1x300xf32> to vector<4x300xf32>
    %19 = arith.addf %15, %18 : vector<4x300xf32>
    %cst_16 = arith.constant 0.000000e+00 : f32
    %20 = vector.broadcast %cst_16 : f32 to vector<4x300xf32>
    %21 = arith.cmpf ogt, %19, %20 : vector<4x300xf32>
    %cst_17 = arith.constant 0.00999999977 : f32
    %22 = vector.broadcast %cst_17 : f32 to vector<4x300xf32>
    %23 = arith.mulf %22, %19 : vector<4x300xf32>
    %24 = arith.select %21, %19, %23 : vector<4x300xi1>, vector<4x300xf32>
    %c0_18 = arith.constant 0 : index
    %c0_19 = arith.constant 0 : index
    %c0_20 = arith.constant 0 : index
    %25 = vector.load %arg7[%c0_18, %c0_19, %c0_20] : memref<1x1x300xf32, #tpu.memory_space<vmem>>, vector<1x1x300xf32>
    %26 = vector.shape_cast %25 : vector<1x1x300xf32> to vector<1x300xf32>
    %27 = vector.broadcast %26 : vector<1x300xf32> to vector<4x300xf32>
    %28 = arith.mulf %24, %27 : vector<4x300xf32>
    %cst_21 = arith.constant dense<0.000000e+00> : vector<4xf32>
    %29 = vector.multi_reduction <add>, %28, %cst_21 [1] : vector<4x300xf32> to vector<4xf32>
    %30 = vector.shape_cast %29 : vector<4xf32> to vector<4x1xf32>
    %31 = arith.index_cast %arg0 : i32 to index
    %c0_22 = arith.constant 0 : index
    %32 = memref.load %arg8[%31, %c0_22] : memref<1x1xf32, #tpu.memory_space<smem>>
    %33 = vector.broadcast %32 : f32 to vector<4x1xf32>
    %34 = arith.addf %30, %33 : vector<4x1xf32>
    %35 = tpu.transpose %34, [1, 0] : vector<4x1xf32> -> vector<1x4xf32>
    %c0_23 = arith.constant 0 : index
    %c0_24 = arith.constant 0 : index
    %36 = vector.load %arg13[%c0_23, %c0_24] : memref<1x4xf32, #tpu.memory_space<vmem>>, vector<1x4xf32>
    tpu.vector_store %arg13[%c0_23, %c0_24], %35 {strides = array<i32>} : memref<1x4xf32, #tpu.memory_space<vmem>>, vector<1x4xf32>,
    return
  }
  func.func @transform_0(%arg0: i32, %arg1: i32) -> (i32, i32) {
    %c0_i32 = arith.constant 0 : i32
    %c0_i32_0 = arith.constant 0 : i32
    return %arg1, %c0_i32 : i32, i32
  }
  func.func @transform_1(%arg0: i32, %arg1: i32) -> (i32, i32, i32) {
    %c0_i32 = arith.constant 0 : i32
    %c0_i32_0 = arith.constant 0 : i32
    %c0_i32_1 = arith.constant 0 : i32
    return %arg0, %c0_i32, %c0_i32_0 : i32, i32, i32
  }
  func.func @transform_2(%arg0: i32, %arg1: i32) -> (i32, i32, i32) {
    %c0_i32 = arith.constant 0 : i32
    %c0_i32_0 = arith.constant 0 : i32
    %c0_i32_1 = arith.constant 0 : i32
    return %arg0, %c0_i32, %c0_i32_0 : i32, i32, i32
  }
  func.func @transform_3(%arg0: i32, %arg1: i32) -> (i32, i32, i32) {
    %c0_i32 = arith.constant 0 : i32
    %c0_i32_0 = arith.constant 0 : i32
    %c0_i32_1 = arith.constant 0 : i32
    return %arg0, %c0_i32, %c0_i32_0 : i32, i32, i32
  }
  func.func @transform_4(%arg0: i32, %arg1: i32) -> (i32, i32, i32) {
    %c0_i32 = arith.constant 0 : i32
    %c0_i32_0 = arith.constant 0 : i32
    %c0_i32_1 = arith.constant 0 : i32
    return %arg0, %c0_i32, %c0_i32_0 : i32, i32, i32
  }
  func.func @transform_5(%arg0: i32, %arg1: i32) -> (i32, i32, i32) {
    %c0_i32 = arith.constant 0 : i32
    %c0_i32_0 = arith.constant 0 : i32
    %c0_i32_1 = arith.constant 0 : i32
    return %arg0, %c0_i32, %c0_i32_0 : i32, i32, i32
  }
  func.func @transform_6(%arg0: i32, %arg1: i32) -> (i32, i32) {
    %c0_i32 = arith.constant 0 : i32
    %c0_i32_0 = arith.constant 0 : i32
    %c0_i32_1 = arith.constant 0 : i32
    return %c0_i32, %c0_i32_0 : i32, i32
  }
  func.func @transform_7(%arg0: i32, %arg1: i32) -> (i32, i32, i32) {
    %c0_i32 = arith.constant 0 : i32
    %c0_i32_0 = arith.constant 0 : i32
    %c0_i32_1 = arith.constant 0 : i32
    return %arg0, %c0_i32, %c0_i32_0 : i32, i32, i32
  }
  func.func @transform_8(%arg0: i32, %arg1: i32) -> (i32, i32, i32) {
    %c0_i32 = arith.constant 0 : i32
    %c0_i32_0 = arith.constant 0 : i32
    %c0_i32_1 = arith.constant 0 : i32
    return %arg0, %c0_i32, %c0_i32_0 : i32, i32, i32
  }
  func.func @transform_9(%arg0: i32, %arg1: i32) -> (i32, i32, i32) {
    %c0_i32 = arith.constant 0 : i32
    %c0_i32_0 = arith.constant 0 : i32
    %c0_i32_1 = arith.constant 0 : i32
    return %arg0, %c0_i32, %c0_i32_0 : i32, i32, i32
  }
  func.func @transform_10(%arg0: i32, %arg1: i32) -> (i32, i32, i32) {
    %c0_i32 = arith.constant 0 : i32
    %c0_i32_0 = arith.constant 0 : i32
    %c0_i32_1 = arith.constant 0 : i32
    return %arg0, %c0_i32, %c0_i32_0 : i32, i32, i32
  }
  func.func @transform_11(%arg0: i32, %arg1: i32) -> (i32, i32) {
    %c1_i32 = arith.constant 1 : i32
    %0 = arith.muli %arg0, %c1_i32 : i32
    %1 = arith.addi %0, %arg1 : i32
    %c0_i32 = arith.constant 0 : i32
    %c0_i32_0 = arith.constant 0 : i32
    return %1, %c0_i32 : i32, i32
  }
}

</mosaic_0001>

<llo_original>
// kernel: tpu_custom_call.1
$region0: #{tpu_custom_call.1}
  #allocation0 [shape = 'u32[]', space=smem, size = 0x4, offset = 0x4, fixed_abs, tag = 'smem constant byte address 0x4 - core index']
  #allocation1 [shape = 'u32[144,128]{1,0:T(1,128)}', space=vmem, size = 0x12000, scoped, tag = 'internal scratch']
  #allocation2 [shape = 'f32[1,1]{1,0:T(1,128)S(6)}', space=smem, size = 0x200, scoped, tag = 'scoped memory for tpu_custom_call.1']
  %s0 = inlined_call_operand.hbm [shape: f32[4,32], index: 0, kind: input, shape index: {}]
  %s1 = inlined_call_operand.hbm [shape: f32[1,32,200], index: 1, kind: input, shape index: {}]
  %s2 = inlined_call_operand.vmem [shape: f32[1,1,200], index: 2, kind: input, shape index: {}]
  %s3 = inlined_call_operand.hbm [shape: f32[1,200,300], index: 3, kind: input, shape index: {}]
  %s4 = inlined_call_operand.vmem [shape: f32[1,1,300], index: 4, kind: input, shape index: {}]
  %s5 = inlined_call_operand.vmem [shape: f32[1,1,300], index: 5, kind: input, shape index: {}]
  %s6 = inlined_call_operand.<no memory space> [shape: f32[1,1], index: 6, kind: input, shape index: {}]
  %s7 = inlined_call_operand.vmem [shape: f32[1,1,200], index: 7, kind: input, shape index: {}]
  %s8 = inlined_call_operand.vmem [shape: f32[1,1,200], index: 8, kind: input, shape index: {}]
  %s9 = inlined_call_operand.vmem [shape: f32[1,1,300], index: 9, kind: input, shape index: {}]
  %s10 = inlined_call_operand.vmem [shape: f32[1,1,300], index: 10, kind: input, shape index: {}]
  %s11 = inlined_call_operand.hbm [shape: f32[1,4], index: 11, kind: output, shape index: {}]
  %s12 = sld [smem:[#allocation0]]
  $region66: #{tpu_custom_call.1} parent=0
    _
  %s14 = ssub.s32 1, %s12
  %s15 = scalar_select 0, %s14, %s12
  %16 = sst [smem:[#allocation2]] %s6
  $region1: #{tpu_custom_call.1} parent=0
    #allocation3 [shape = 'u8[2048]{0}', space=vmem, size = 0x800, scoped, tag = 'input window, operand 0, single buffered']
    #allocation4 [shape = 's32[1]{0}', space=sflag, size = 0x4, scoped, tag = 'scoped memory for tpu_custom_call.1']
    #allocation5 [shape = 's32[1]{0}', space=sflag, size = 0x4, scoped, tag = 'scoped memory for tpu_custom_call.1']
    #allocation6 [shape = 'u8[32768]{0}', space=vmem, size = 0x8000, scoped, tag = 'input window, operand 1, single buffered']
    #allocation7 [shape = 's32[1]{0}', space=sflag, size = 0x4, scoped, tag = 'scoped memory for tpu_custom_call.1']
    #allocation8 [shape = 'u8[307200]{0}', space=vmem, size = 0x4b000, scoped, tag = 'input window, operand 3, single buffered']
    #allocation9 [shape = 'u8[512]{0}', space=vmem, size = 0x400, scoped, tag = 'output window, operand 0, single buffered']
    %17 = vsyncpa [#allocation4], 0
    %18 = vsyncpa [#allocation7], 0
    %19 = vsyncpa [#allocation5], 0
    // Predicated region
    $region2: #{tpu_custom_call.1} parent=1 // pred_check
      _
    $region3: #{tpu_custom_call.1} parent=1 // pred_check_branch
      %21 = sbr.rel (0) target = $region5
    $region4: #{tpu_custom_call.1} parent=1 // pred_region
      %s23 = ssub.s32 64, 64
      %24 = vsyncadd [#allocation4], %s23
      %s26 = sshll.u32 [#allocation3], 4
      %s27 = int_to_ptr.vmem [resolvable:$true] %s26
      %29 = dma.hbm_to_vmem [thread:$0]  %s0, 64, %s27, [#allocation4]
    $region5: #{tpu_custom_call.1} parent=1 // pred_fallthru
      _
    // Predicated region
    $region6: #{tpu_custom_call.1} parent=1 // pred_check
      _
    $region7: #{tpu_custom_call.1} parent=1 // pred_check_branch
      %31 = sbr.rel (0) target = $region9
    $region8: #{tpu_custom_call.1} parent=1 // pred_region
      %s33 = ssub.s32 1024, 1024
      %34 = vsyncadd [#allocation7], %s33
      %s35 = sshll.u32 [#allocation6], 4
      %s36 = int_to_ptr.vmem [resolvable:$true] %s35
      %41 = dma.hbm_to_vmem [thread:$0]  %s1, 1024, %s36, [#allocation7], 256, 256, 16
    $region9: #{tpu_custom_call.1} parent=1 // pred_fallthru
      _
    // Predicated region
    $region10: #{tpu_custom_call.1} parent=1 // pred_check
      _
    $region11: #{tpu_custom_call.1} parent=1 // pred_check_branch
      %43 = sbr.rel (0) target = $region13
    $region12: #{tpu_custom_call.1} parent=1 // pred_region
      _
    $region13: #{tpu_custom_call.1} parent=1 // pred_fallthru
      _
    // Predicated region
    $region14: #{tpu_custom_call.1} parent=1 // pred_check
      _
    $region15: #{tpu_custom_call.1} parent=1 // pred_check_branch
      %45 = sbr.rel (0) target = $region17
    $region16: #{tpu_custom_call.1} parent=1 // pred_region
      %s47 = ssub.s32 9600, 9600
      %48 = vsyncadd [#allocation7], %s47
      %s49 = sshll.u32 [#allocation8], 4
      %s50 = int_to_ptr.vmem [resolvable:$true] %s49
      %55 = dma.hbm_to_vmem [thread:$0]  %s3, 9600, %s50, [#allocation7], 384, 384, 24
    $region17: #{tpu_custom_call.1} parent=1 // pred_fallthru
      _
    // Predicated region
    $region18: #{tpu_custom_call.1} parent=1 // pred_check
      _
    $region19: #{tpu_custom_call.1} parent=1 // pred_check_branch
      %57 = sbr.rel (0) target = $region21
    $region20: #{tpu_custom_call.1} parent=1 // pred_region
      _
    $region21: #{tpu_custom_call.1} parent=1 // pred_fallthru
      _
    // Predicated region
    $region22: #{tpu_custom_call.1} parent=1 // pred_check
      _
    $region23: #{tpu_custom_call.1} parent=1 // pred_check_branch
      %59 = sbr.rel (0) target = $region25
    $region24: #{tpu_custom_call.1} parent=1 // pred_region
      _
    $region25: #{tpu_custom_call.1} parent=1 // pred_fallthru
      _
    // Predicated region
    $region26: #{tpu_custom_call.1} parent=1 // pred_check
      _
    $region27: #{tpu_custom_call.1} parent=1 // pred_check_branch
      %61 = sbr.rel (0) target = $region29
    $region28: #{tpu_custom_call.1} parent=1 // pred_region
      _
    $region29: #{tpu_custom_call.1} parent=1 // pred_fallthru
      _
    // Predicated region
    $region30: #{tpu_custom_call.1} parent=1 // pred_check
      _
    $region31: #{tpu_custom_call.1} parent=1 // pred_check_branch
      %63 = sbr.rel (0) target = $region33
    $region32: #{tpu_custom_call.1} parent=1 // pred_region
      _
    $region33: #{tpu_custom_call.1} parent=1 // pred_fallthru
      _
    // Predicated region
    $region34: #{tpu_custom_call.1} parent=1 // pred_check
      _
    $region35: #{tpu_custom_call.1} parent=1 // pred_check_branch
      %65 = sbr.rel (0) target = $region37
    $region36: #{tpu_custom_call.1} parent=1 // pred_region
      _
    $region37: #{tpu_custom_call.1} parent=1 // pred_fallthru
      _
    // Predicated region
    $region38: #{tpu_custom_call.1} parent=1 // pred_check
      _
    $region39: #{tpu_custom_call.1} parent=1 // pred_check_branch
      %67 = sbr.rel (0) target = $region41
    $region40: #{tpu_custom_call.1} parent=1 // pred_region
      _
    $region41: #{tpu_custom_call.1} parent=1 // pred_fallthru
      _
    // Predicated region
    $region42: #{tpu_custom_call.1} parent=1 // pred_check
      _
    $region43: #{tpu_custom_call.1} parent=1 // pred_check_branch
      %69 = sbr.rel (0) target = $region45
    $region44: #{tpu_custom_call.1} parent=1 // pred_region
      _
    $region45: #{tpu_custom_call.1} parent=1 // pred_fallthru
      _
    // Predicated region
    $region46: #{tpu_custom_call.1} parent=1 // pred_check
      _
    $region47: #{tpu_custom_call.1} parent=1 // pred_check_branch
      %71 = sbr.rel (0) target = $region49
    $region48: #{tpu_custom_call.1} parent=1 // pred_region
      %72 = dma.done [#allocation4], 64
    $region49: #{tpu_custom_call.1} parent=1 // pred_fallthru
      _
    // Predicated region
    $region50: #{tpu_custom_call.1} parent=1 // pred_check
      _
    $region51: #{tpu_custom_call.1} parent=1 // pred_check_branch
      %74 = sbr.rel (0) target = $region53
    $region52: #{tpu_custom_call.1} parent=1 // pred_region
      %75 = dma.done [#allocation7], 1024
    $region53: #{tpu_custom_call.1} parent=1 // pred_fallthru
      _
    // Predicated region
    $region54: #{tpu_custom_call.1} parent=1 // pred_check
      _
    $region55: #{tpu_custom_call.1} parent=1 // pred_check_branch
      %77 = sbr.rel (0) target = $region57
    $region56: #{tpu_custom_call.1} parent=1 // pred_region
      %78 = dma.done [#allocation7], 9600
    $region57: #{tpu_custom_call.1} parent=1 // pred_fallthru
      _
    %s79 = sadd.s32 0, 0
    %v80 = vld [vmem:[#allocation3] sm:$0xf]
    %v81 = vld [vmem:[#allocation6] sm:$0xff]
    %v82 = vld [vmem:[#allocation6 + $0x8] sm:$0xff]
    %v83 = vld [vmem:[#allocation6 + $0x10] sm:$0xff]
    %v84 = vld [vmem:[#allocation6 + $0x18] sm:$0xff]
    %v85 = vld [vmem:[#allocation6 + $0x20] sm:$0xff]
    %v86 = vld [vmem:[#allocation6 + $0x28] sm:$0xff]
    %v87 = vld [vmem:[#allocation6 + $0x30] sm:$0xff]
    %v88 = vld [vmem:[#allocation6 + $0x38] sm:$0xff]
    %v89 = vld [vmem:[#allocation8] sm:$0xff]
    %v90 = vld [vmem:[#allocation8 + $0x8] sm:$0xff]
    %v91 = vld [vmem:[#allocation8 + $0x10] sm:$0xff]
    %v92 = vld [vmem:[#allocation8 + $0x18] sm:$0xff]
    %v93 = vld [vmem:[#allocation8 + $0x20] sm:$0xff]
    %v94 = vld [vmem:[#allocation8 + $0x28] sm:$0xff]
    %v95 = vld [vmem:[#allocation8 + $0x30] sm:$0xff]
    %v96 = vld [vmem:[#allocation8 + $0x38] sm:$0xff]
    %v97 = vld [vmem:[#allocation8 + $0x40] sm:$0xff]
    %v98 = vld [vmem:[#allocation8 + $0x48] sm:$0xff]
    %v99 = vld [vmem:[#allocation8 + $0x50] sm:$0xff]
    %v100 = vld [vmem:[#allocation8 + $0x58] sm:$0xff]
    %v101 = vld [vmem:[#allocation8 + $0x60] sm:$0xff]
    %v102 = vld [vmem:[#allocation8 + $0x68] sm:$0xff]
    %v103 = vld [vmem:[#allocation8 + $0x70] sm:$0xff]
    %v104 = vld [vmem:[#allocation8 + $0x78] sm:$0xff]
    %v105 = vld [vmem:[#allocation8 + $0x80] sm:$0xff]
    %v106 = vld [vmem:[#allocation8 + $0x88] sm:$0xff]
    %v107 = vld [vmem:[#allocation8 + $0x90] sm:$0xff]
    %v108 = vld [vmem:[#allocation8 + $0x98] sm:$0xff]
    %v109 = vld [vmem:[#allocation8 + $0xa0] sm:$0xff]
    %v110 = vld [vmem:[#allocation8 + $0xa8] sm:$0xff]
    %v111 = vld [vmem:[#allocation8 + $0xb0] sm:$0xff]
    %v112 = vld [vmem:[#allocation8 + $0xb8] sm:$0xff]
    %v113 = vld [vmem:[#allocation8 + $0xc0] sm:$0xff]
    %v114 = vld [vmem:[#allocation8 + $0xc8] sm:$0xff]
    %v115 = vld [vmem:[#allocation8 + $0xd0] sm:$0xff]
    %v116 = vld [vmem:[#allocation8 + $0xd8] sm:$0xff]
    %v117 = vld [vmem:[#allocation8 + $0xe0] sm:$0xff]
    %v118 = vld [vmem:[#allocation8 + $0xe8] sm:$0xff]
    %v119 = vld [vmem:[#allocation8 + $0xf0] sm:$0xff]
    %v120 = vld [vmem:[#allocation8 + $0xf8] sm:$0xff]
    %v121 = vld [vmem:[#allocation8 + $0x100] sm:$0xff]
    %v122 = vld [vmem:[#allocation8 + $0x108] sm:$0xff]
    %v123 = vld [vmem:[#allocation8 + $0x110] sm:$0xff]
    %v124 = vld [vmem:[#allocation8 + $0x118] sm:$0xff]
    %v125 = vld [vmem:[#allocation8 + $0x120] sm:$0xff]
    %v126 = vld [vmem:[#allocation8 + $0x128] sm:$0xff]
    %v127 = vld [vmem:[#allocation8 + $0x130] sm:$0xff]
    %v128 = vld [vmem:[#allocation8 + $0x138] sm:$0xff]
    %v129 = vld [vmem:[#allocation8 + $0x140] sm:$0xff]
    %v130 = vld [vmem:[#allocation8 + $0x148] sm:$0xff]
    %v131 = vld [vmem:[#allocation8 + $0x150] sm:$0xff]
    %v132 = vld [vmem:[#allocation8 + $0x158] sm:$0xff]
    %v133 = vld [vmem:[#allocation8 + $0x160] sm:$0xff]
    %v134 = vld [vmem:[#allocation8 + $0x168] sm:$0xff]
    %v135 = vld [vmem:[#allocation8 + $0x170] sm:$0xff]
    %v136 = vld [vmem:[#allocation8 + $0x178] sm:$0xff]
    %v137 = vld [vmem:[#allocation8 + $0x180] sm:$0xff]
    %v138 = vld [vmem:[#allocation8 + $0x188] sm:$0xff]
    %v139 = vld [vmem:[#allocation8 + $0x190] sm:$0xff]
    %v140 = vld [vmem:[#allocation8 + $0x198] sm:$0xff]
    %v141 = vld [vmem:[#allocation8 + $0x1a0] sm:$0xff]
    %v142 = vld [vmem:[#allocation8 + $0x1a8] sm:$0xff]
    %v143 = vld [vmem:[#allocation8 + $0x1b0] sm:$0xff]
    %v144 = vld [vmem:[#allocation8 + $0x1b8] sm:$0xff]
    %v145 = vld [vmem:[#allocation8 + $0x1c0] sm:$0xff]
    %v146 = vld [vmem:[#allocation8 + $0x1c8] sm:$0xff]
    %v147 = vld [vmem:[#allocation8 + $0x1d0] sm:$0xff]
    %v148 = vld [vmem:[#allocation8 + $0x1d8] sm:$0xff]
    %v149 = vld [vmem:[#allocation8 + $0x1e0] sm:$0xff]
    %v150 = vld [vmem:[#allocation8 + $0x1e8] sm:$0xff]
    %v151 = vld [vmem:[#allocation8 + $0x1f0] sm:$0xff]
    %v152 = vld [vmem:[#allocation8 + $0x1f8] sm:$0xff]
    %v153 = vld [vmem:[#allocation8 + $0x200] sm:$0xff]
    %v154 = vld [vmem:[#allocation8 + $0x208] sm:$0xff]
    %v155 = vld [vmem:[#allocation8 + $0x210] sm:$0xff]
    %v156 = vld [vmem:[#allocation8 + $0x218] sm:$0xff]
    %v157 = vld [vmem:[#allocation8 + $0x220] sm:$0xff]
    %v158 = vld [vmem:[#allocation8 + $0x228] sm:$0xff]
    %v159 = vld [vmem:[#allocation8 + $0x230] sm:$0xff]
    %v160 = vld [vmem:[#allocation8 + $0x238] sm:$0xff]
    %v161 = vld [vmem:[#allocation8 + $0x240] sm:$0xff]
    %v162 = vld [vmem:[#allocation8 + $0x248] sm:$0xff]
    %v163 = vld [vmem:[#allocation8 + $0x250] sm:$0xff]
    %v164 = vld [vmem:[%s2] sm:$0x3]
    %v166 = vlaneseq
    %v167 = vshrl.u32 %v166, 7
    %v168 = vsub.s32 0, %v167
    %v169 = vrot.slane %v164, %v168
    %v170 = vlaneseq
    %v171 = vshrl.u32 %v170, 7
    %v172 = vsub.s32 1, %v171
    %v173 = vrot.slane %v164, %v172
    %vm176 = vcmask 261120
    %v178 = vsel %vm176, %v80, 0
    %180 = vmatprep.subr.mxu0 %v82
    %181 = vmatpush1.msra.mxu0 %v81
    %182 = vmatprep.subr.mxu0 %v84
    %183 = vmatpush1.msra.mxu0 %v83
    %184 = vmatprep.subr.mxu0 %v86
    %185 = vmatpush1.msra.mxu0 %v85
    %186 = vmatprep.subr.mxu0 %v88
    %187 = vmatpush1.msra.mxu0 %v87
    %188 = vmatprep.subr.mxu0 0.0
    %189 = vmatpush1.msra.mxu0 0.0
    %190 = vmatprep.subr.mxu0 0.0
    %191 = vmatpush1.msra.mxu0 0.0
    %192 = vmatprep.subr.mxu0 0.0
    %193 = vmatpush1.msra.mxu0 0.0
    %194 = vmatprep.subr.mxu0 0.0
    %195 = vmatpush1.msra.mxu0 0.0
    %196 = vmatprep.subr.mxu0 0.0
    %197 = vmatpush1.msra.mxu0 0.0
    %198 = vmatprep.subr.mxu0 0.0
    %199 = vmatpush1.msra.mxu0 0.0
    %200 = vmatprep.subr.mxu0 0.0
    %201 = vmatpush1.msra.mxu0 0.0
    %202 = vmatprep.subr.mxu0 0.0
    %203 = vmatpush1.msra.mxu0 0.0
    %204 = vmatprep.subr.mxu0 0.0
    %205 = vmatpush1.msra.mxu0 0.0
    %206 = vmatprep.subr.mxu0 0.0
    %207 = vmatpush1.msra.mxu0 0.0
    %208 = vmatprep.subr.mxu0 0.0
    %209 = vmatpush1.msra.mxu0 0.0
    %210 = vmatprep.subr.mxu0 0.0
    %211 = vmatpush1.msra.mxu0 0.0
    %212 = vmatprep.subr.mxu0 0.0
    %213 = vmatpush1.msra.mxu0 0.0
    %214 = vmatprep.subr.mxu0 0.0
    %215 = vmatpush1.msra.mxu0 0.0
    %216 = vmatprep.subr.mxu0 0.0
    %217 = vmatpush1.msra.mxu0 0.0
    %218 = vmatprep.subr.mxu0 0.0
    %219 = vmatpush1.msra.mxu0 0.0
    %220 = vmatprep.subr.mxu0 0.0
    %221 = vmatpush1.msra.mxu0 0.0
    %222 = vmatprep.subr.mxu0 0.0
    %223 = vmatpush1.msra.mxu0 0.0
    %224 = vmatprep.subr.mxu0 0.0
    %225 = vmatpush1.msra.mxu0 0.0
    %226 = vmatprep.subr.mxu0 0.0
    %227 = vmatpush1.msra.mxu0 0.0
    %228 = vmatprep.subr.mxu0 0.0
    %229 = vmatpush1.msra.mxu0 0.0
    %230 = vmatprep.subr.mxu0 0.0
    %231 = vmatpush1.msra.mxu0 0.0
    %232 = vmatprep.subr.mxu0 0.0
    %233 = vmatpush1.msra.mxu0 0.0
    %234 = vmatprep.subr.mxu0 0.0
    %235 = vmatpush1.msra.mxu0 0.0
    %236 = vmatprep.subr.mxu0 0.0
    %237 = vmatpush1.msra.mxu0 0.0
    %238 = vmatprep.subr.mxu0 0.0
    %239 = vmatpush1.msra.mxu0 0.0
    %240 = vmatprep.subr.mxu0 0.0
    %241 = vmatpush1.msra.mxu0 0.0
    %242 = vmatprep.subr.mxu0 0.0
    %243 = vmatpush1.msra.mxu0 0.0
    %244 = vmatprep.mubr.f32.mxu0 0.0
    %245 = vmatmul.mubr.f32.gmra.mrb[0].mxu0 %v178
    %v246 = vpop.f32.mrb[0].mxu0
    %v247 = vadd.f32 %v169, %v246
    %v248 = vpop.f32.mrb[0].mxu0
    %v249 = vadd.f32 %v173, %v248
    %250 = vdwg.mxu0
    %vm251 = vcmp.gt.f32.partialorder %v247, 0.0
    %vm252 = vcmp.gt.f32.partialorder %v249, 0.0
    %v253 = vmul.f32 %v247, 0.01
    %v254 = vmul.f32 %v249, 0.01
    %v255 = vsel %vm251, %v247, %v253
    %v256 = vsel %vm252, %v249, %v254
    %v257 = vld [vmem:[%s4] sm:$0x7]
    %v259 = vlaneseq
    %v260 = vshrl.u32 %v259, 7
    %v261 = vsub.s32 0, %v260
    %v262 = vrot.slane %v257, %v261
    %v263 = vlaneseq
    %v264 = vshrl.u32 %v263, 7
    %v265 = vsub.s32 1, %v264
    %v266 = vrot.slane %v257, %v265
    %v267 = vlaneseq
    %v268 = vshrl.u32 %v267, 7
    %v269 = vsub.s32 2, %v268
    %v270 = vrot.slane %v257, %v269
    %vm274 = vcmask 588800
    %v276 = vsel %vm274, %v256, 0
    %278 = vmatprep.subr.mxu0 %v90
    %279 = vmatpush1.msra.mxu0 %v89
    %280 = vmatprep.subr.mxu0 %v93
    %281 = vmatpush1.msra.mxu0 %v92
    %282 = vmatprep.subr.mxu0 %v96
    %283 = vmatpush1.msra.mxu0 %v95
    %284 = vmatprep.subr.mxu0 %v99
    %285 = vmatpush1.msra.mxu0 %v98
    %286 = vmatprep.subr.mxu0 %v102
    %287 = vmatpush1.msra.mxu0 %v101
    %288 = vmatprep.subr.mxu0 %v105
    %289 = vmatpush1.msra.mxu0 %v104
    %290 = vmatprep.subr.mxu0 %v108
    %291 = vmatpush1.msra.mxu0 %v107
    %292 = vmatprep.subr.mxu0 %v111
    %293 = vmatpush1.msra.mxu0 %v110
    %294 = vmatprep.subr.mxu0 %v114
    %295 = vmatpush1.msra.mxu0 %v113
    %296 = vmatprep.subr.mxu0 %v117
    %297 = vmatpush1.msra.mxu0 %v116
    %298 = vmatprep.subr.mxu0 %v120
    %299 = vmatpush1.msra.mxu0 %v119
    %300 = vmatprep.subr.mxu0 %v123
    %301 = vmatpush1.msra.mxu0 %v122
    %302 = vmatprep.subr.mxu0 %v126
    %303 = vmatpush1.msra.mxu0 %v125
    %304 = vmatprep.subr.mxu0 %v129
    %305 = vmatpush1.msra.mxu0 %v128
    %306 = vmatprep.subr.mxu0 %v132
    %307 = vmatpush1.msra.mxu0 %v131
    %308 = vmatprep.subr.mxu0 %v135
    %309 = vmatpush1.msra.mxu0 %v134
    %310 = vmatprep.subr.mxu0 %v138
    %311 = vmatpush1.msra.mxu0 %v137
    %312 = vmatprep.subr.mxu0 %v141
    %313 = vmatpush1.msra.mxu0 %v140
    %314 = vmatprep.subr.mxu0 %v144
    %315 = vmatpush1.msra.mxu0 %v143
    %316 = vmatprep.subr.mxu0 %v147
    %317 = vmatpush1.msra.mxu0 %v146
    %318 = vmatprep.subr.mxu0 %v150
    %319 = vmatpush1.msra.mxu0 %v149
    %320 = vmatprep.subr.mxu0 %v153
    %321 = vmatpush1.msra.mxu0 %v152
    %322 = vmatprep.subr.mxu0 %v156
    %323 = vmatpush1.msra.mxu0 %v155
    %324 = vmatprep.subr.mxu0 %v159
    %325 = vmatpush1.msra.mxu0 %v158
    %326 = vmatprep.subr.mxu0 %v162
    %327 = vmatpush1.msra.mxu0 %v161
    %328 = vmatprep.subr.mxu0 0.0
    %329 = vmatpush1.msra.mxu0 0.0
    %330 = vmatprep.subr.mxu0 0.0
    %331 = vmatpush1.msra.mxu0 0.0
    %332 = vmatprep.subr.mxu0 0.0
    %333 = vmatpush1.msra.mxu0 0.0
    %334 = vmatprep.subr.mxu0 0.0
    %335 = vmatpush1.msra.mxu0 0.0
    %336 = vmatprep.subr.mxu0 0.0
    %337 = vmatpush1.msra.mxu0 0.0
    %338 = vmatprep.subr.mxu0 0.0
    %339 = vmatpush1.msra.mxu0 0.0
    %340 = vmatprep.subr.mxu0 0.0
    %341 = vmatpush1.msra.mxu0 0.0
    %342 = vmatprep.mubr.f32.mxu0 %v276
    %343 = vmatmul.mubr.f32.gmra.mrb[0].mxu0 %v255
    %v344 = vpop.f32.mrb[0].mxu0
    %v345 = vadd.f32 %v262, %v344
    %v346 = vpop.f32.mrb[0].mxu0
    %v347 = vadd.f32 %v266, %v346
    %348 = vdwg.mxu0
    %349 = vmatprep.subr.mxu0 0.0
    %350 = vmatpush1.msra.mxu0 %v91
    %351 = vmatprep.subr.mxu0 0.0
    %352 = vmatpush1.msra.mxu0 %v94
    %353 = vmatprep.subr.mxu0 0.0
    %354 = vmatpush1.msra.mxu0 %v97
    %355 = vmatprep.subr.mxu0 0.0
    %356 = vmatpush1.msra.mxu0 %v100
    %357 = vmatprep.subr.mxu0 0.0
    %358 = vmatpush1.msra.mxu0 %v103
    %359 = vmatprep.subr.mxu0 0.0
    %360 = vmatpush1.msra.mxu0 %v106
    %361 = vmatprep.subr.mxu0 0.0
    %362 = vmatpush1.msra.mxu0 %v109
    %363 = vmatprep.subr.mxu0 0.0
    %364 = vmatpush1.msra.mxu0 %v112
    %365 = vmatprep.subr.mxu0 0.0
    %366 = vmatpush1.msra.mxu0 %v115
    %367 = vmatprep.subr.mxu0 0.0
    %368 = vmatpush1.msra.mxu0 %v118
    %369 = vmatprep.subr.mxu0 0.0
    %370 = vmatpush1.msra.mxu0 %v121
    %371 = vmatprep.subr.mxu0 0.0
    %372 = vmatpush1.msra.mxu0 %v124
    %373 = vmatprep.subr.mxu0 0.0
    %374 = vmatpush1.msra.mxu0 %v127
    %375 = vmatprep.subr.mxu0 0.0
    %376 = vmatpush1.msra.mxu0 %v130
    %377 = vmatprep.subr.mxu0 0.0
    %378 = vmatpush1.msra.mxu0 %v133
    %379 = vmatprep.subr.mxu0 0.0
    %380 = vmatpush1.msra.mxu0 %v136
    %381 = vmatprep.subr.mxu0 0.0
    %382 = vmatpush1.msra.mxu0 %v139
    %383 = vmatprep.subr.mxu0 0.0
    %384 = vmatpush1.msra.mxu0 %v142
    %385 = vmatprep.subr.mxu0 0.0
    %386 = vmatpush1.msra.mxu0 %v145
    %387 = vmatprep.subr.mxu0 0.0
    %388 = vmatpush1.msra.mxu0 %v148
    %389 = vmatprep.subr.mxu0 0.0
    %390 = vmatpush1.msra.mxu0 %v151
    %391 = vmatprep.subr.mxu0 0.0
    %392 = vmatpush1.msra.mxu0 %v154
    %393 = vmatprep.subr.mxu0 0.0
    %394 = vmatpush1.msra.mxu0 %v157
    %395 = vmatprep.subr.mxu0 0.0
    %396 = vmatpush1.msra.mxu0 %v160
    %397 = vmatprep.subr.mxu0 0.0
    %398 = vmatpush1.msra.mxu0 %v163
    %399 = vmatprep.subr.mxu0 0.0
    %400 = vmatpush1.msra.mxu0 0.0
    %401 = vmatprep.subr.mxu0 0.0
    %402 = vmatpush1.msra.mxu0 0.0
    %403 = vmatprep.subr.mxu0 0.0
    %404 = vmatpush1.msra.mxu0 0.0
    %405 = vmatprep.subr.mxu0 0.0
    %406 = vmatpush1.msra.mxu0 0.0
    %407 = vmatprep.subr.mxu0 0.0
    %408 = vmatpush1.msra.mxu0 0.0
    %409 = vmatprep.subr.mxu0 0.0
    %410 = vmatpush1.msra.mxu0 0.0
    %411 = vmatprep.subr.mxu0 0.0
    %412 = vmatpush1.msra.mxu0 0.0
    %413 = vmatprep.mubr.f32.mxu0 %v276
    %414 = vmatmul.mubr.f32.gmra.mrb[0].mxu0 %v255
    %v415 = vpop.f32.mrb[0].mxu0
    %v416 = vadd.f32 %v270, %v415
    %v417 = vpop.f32.mrb[0].mxu0
    %418 = vdwg.mxu0
    %vm419 = vcmp.gt.f32.partialorder %v345, 0.0
    %vm420 = vcmp.gt.f32.partialorder %v347, 0.0
    %vm421 = vcmp.gt.f32.partialorder %v416, 0.0
    %v422 = vmul.f32 %v345, 0.01
    %v423 = vmul.f32 %v347, 0.01
    %v424 = vmul.f32 %v416, 0.01
    %v425 = vsel %vm419, %v345, %v422
    %v426 = vsel %vm420, %v347, %v423
    %v427 = vsel %vm421, %v416, %v424
    %v428 = vld [vmem:[%s5] sm:$0x7]
    %v430 = vlaneseq
    %v431 = vshrl.u32 %v430, 7
    %v432 = vsub.s32 0, %v431
    %v433 = vrot.slane %v428, %v432
    %v434 = vlaneseq
    %v435 = vshrl.u32 %v434, 7
    %v436 = vsub.s32 1, %v435
    %v437 = vrot.slane %v428, %v436
    %v438 = vlaneseq
    %v439 = vshrl.u32 %v438, 7
    %v440 = vsub.s32 2, %v439
    %v441 = vrot.slane %v428, %v440
    %v445 = vmul.f32 %v425, %v433
    %v446 = vmul.f32 %v426, %v437
    %v447 = vmul.f32 %v427, %v441
    %vm448 = vcmask 1043456
    %v449 = vsel %vm448, %v445, 0.0
    %v450 = vsel %vm448, %v446, 0.0
    %v451 = vadd.f32 %v449, %v450
    %vm452 = vcmask 355328
    %v453 = vsel %vm452, %v447, 0.0
    %v454 = vadd.f32 %v451, %v453
    %455 = vadd.xlane.f32.xlu0 %v454
    %v456 = vpop.xlane.xlu0 %455
    %s457 = smul.u32 0, 128
    %s458 = sld [smem:[#allocation2 + %s457]]
    %v459 = vstv %s458
    %v460 = vadd.f32 %v456, %v459
    %461 = vxpose.xlu0.b32.start [1/16] %v460, 128
    %462 = vxpose.xlu0.b32.cont [2/16] 0.0, 128
    %463 = vxpose.xlu0.b32.cont [3/16] 0.0, 128
    %464 = vxpose.xlu0.b32.cont [4/16] 0.0, 128
    %465 = vxpose.xlu0.b32.cont [5/16] 0.0, 128
    %466 = vxpose.xlu0.b32.cont [6/16] 0.0, 128
    %467 = vxpose.xlu0.b32.cont [7/16] 0.0, 128
    %468 = vxpose.xlu0.b32.cont [8/16] 0.0, 128
    %469 = vxpose.xlu0.b32.cont [9/16] 0.0, 128
    %470 = vxpose.xlu0.b32.cont [10/16] 0.0, 128
    %471 = vxpose.xlu0.b32.cont [11/16] 0.0, 128
    %472 = vxpose.xlu0.b32.cont [12/16] 0.0, 128
    %473 = vxpose.xlu0.b32.cont [13/16] 0.0, 128
    %474 = vxpose.xlu0.b32.cont [14/16] 0.0, 128
    %475 = vxpose.xlu0.b32.cont [15/16] 0.0, 128
    %476 = vxpose.xlu0.b32.end [16/16] 0.0, 128
    %v477 = vpop.trf.xlu0
    %v478 = vpop.trf.xlu0
    %v479 = vpop.trf.xlu0
    %v480 = vpop.trf.xlu0
    %v481 = vpop.trf.xlu0
    %v482 = vpop.trf.xlu0
    %v483 = vpop.trf.xlu0
    %v484 = vpop.trf.xlu0
    %v485 = vpop.trf.xlu0
    %v486 = vpop.trf.xlu0
    %v487 = vpop.trf.xlu0
    %v488 = vpop.trf.xlu0
    %v489 = vpop.trf.xlu0
    %v490 = vpop.trf.xlu0
    %v491 = vpop.trf.xlu0
    %v492 = vpop.trf.xlu0
    %vm493 = vcmask 24576
    %494 = vst.msk [vmem:[#allocation9] sm:$0x1] %vm493, %v477
    // Predicated region
    $region58: #{tpu_custom_call.1} parent=1 // pred_check
      _
    $region59: #{tpu_custom_call.1} parent=1 // pred_check_branch
      %496 = sbr.rel (0) target = $region61
    $region60: #{tpu_custom_call.1} parent=1 // pred_region
      %s497 = sadd.s32 0, 0
      %s499 = ssub.s32 16, 16
      %500 = vsyncadd [#allocation5], %s499
      %s501 = smul.addr %s497, 16
      %s502 = scalar_lea.hbm %s11, %s501
      %s504 = sshll.u32 [#allocation9], 4
      %s505 = int_to_ptr.vmem [resolvable:$true] %s504
      %507 = dma.vmem_to_hbm [thread:$0]  %s505, 16, %s502, [#allocation5]
    $region61: #{tpu_custom_call.1} parent=1 // pred_fallthru
      _
    // Predicated region
    $region62: #{tpu_custom_call.1} parent=1 // pred_check
      _
    $region63: #{tpu_custom_call.1} parent=1 // pred_check_branch
      %509 = sbr.rel (0) target = $region65
    $region64: #{tpu_custom_call.1} parent=1 // pred_region
      %510 = dma.done [#allocation5], 16
    $region65: #{tpu_custom_call.1} parent=1 // pred_fallthru
      _
    %511 = vsyncpa [#allocation4], 1
    %512 = vsyncpa [#allocation7], 1
    %513 = vsyncpa [#allocation5], 1

</llo_original>
